<compile_context>
chip_gen: v6e
topology: v6e:2x2x1
jax: 0.10.0
libtpu: 0.0.40
codegen_flags: <defaults>
</compile_context>

<pallas_src>
import math

import jax
import jax.numpy as jnp
from jax import lax
from jax.experimental import pallas as pl
from jax.experimental.pallas import tpu as pltpu


# ----------------------------------------------------------------------------
# Kernel 1: fused GraphConv(D -> 1) + SelectTopK scoring (lane-dense output).
#   score[0, i] = tanh( sum_j adj[i, j] * v[0, j] + r[0, i] )
# where v = x @ (w_rel * sign) and r = x @ (w_root * sign) + b * sign are
# computed once outside (O(N*D) plumbing).
# ----------------------------------------------------------------------------
def _score_kernel(v_ref, adj_ref, r_ref, score_ref):
    # (1, N) x (TM, N), contracting the last axis of both -> (1, TM).
    # This is exactly (adj_tile @ v) emitted directly in lane-dense layout.
    s = lax.dot_general(
        v_ref[...], adj_ref[...],
        dimension_numbers=(((1,), (1,)), ((), ())),
        preferred_element_type=jnp.float32)
    score_ref[...] = jnp.tanh(s + r_ref[...])


def compute_scores(adj, v_t, r_t, *, max_block_rows=512):
    """score (1, N) = tanh(adj @ v + r), row-tiled over adj."""
    n = adj.shape[0]
    itemsize = adj.dtype.itemsize
    if n <= max_block_rows:
        tm = n                                # single block, covers full dims
    else:
        budget = 32 * 1024 * 1024             # 2 adj pipeline buffers <= 32 MiB
        tm = max(8, min(max_block_rows, budget // (2 * n * itemsize)))
        tm = (tm // 8) * 8                    # sublane-aligned row tile
    grid = (pl.cdiv(n, tm),)
    return pl.pallas_call(
        _score_kernel,
        out_shape=jax.ShapeDtypeStruct((1, n), jnp.float32),
        grid=grid,
        in_specs=[
            pl.BlockSpec((1, n), lambda i: (0, 0)),     # v_t : resident
            pl.BlockSpec((tm, n), lambda i: (i, 0)),    # adj : row tile
            pl.BlockSpec((1, tm), lambda i: (0, i)),    # r_t : lane tile
        ],
        out_specs=pl.BlockSpec((1, tm), lambda i: (0, i)),
        compiler_params=pltpu.CompilerParams(
            dimension_semantics=("parallel",),          # v7x megacore split
            vmem_limit_bytes=48 * 1024 * 1024),         # > v5e 16 MiB default
        cost_estimate=pl.CostEstimate(
            flops=2 * n * n + 2 * n,
            transcendentals=n,
            bytes_accessed=n * n * itemsize + 4 * n * 4),
    )(v_t.astype(adj.dtype), adj, r_t)


# ----------------------------------------------------------------------------
# Kernel 2: pipelined row gather + scale.
#   new_x[k, :] = x[perm[k], :] * sel_score[k]
# perm is scalar-prefetched into SMEM and drives a pl.Element row-gather DMA
# per grid step; sel_score (already tanh'd top-k values) lives in SMEM.
# ----------------------------------------------------------------------------
def _gather_scale_kernel(perm_ref, x_row_ref, s_ref, out_ref):
    del perm_ref                       # consumed by the index_maps only
    k = pl.program_id(0)
    out_ref[0] = (x_row_ref[...] * s_ref[k]).astype(out_ref.dtype)


def gather_and_scale(x, sel_score, perm):
    _, d = x.shape
    num_sel = perm.shape[0]
    out = pl.pallas_call(
        _gather_scale_kernel,
        out_shape=jax.ShapeDtypeStruct((num_sel, 1, d), x.dtype),
        grid_spec=pltpu.PrefetchScalarGridSpec(
            num_scalar_prefetch=1,             # perm -> SMEM for the index_maps
            grid=(num_sel,),
            in_specs=[
                # Gather row perm[i] of x straight from HBM, double-buffered.
                pl.BlockSpec((pl.Element(1), d), lambda i, perm: (perm[i], 0)),
                # Selected scores: one scalar per step, kept in SMEM.
                pl.BlockSpec(memory_space=pltpu.MemorySpace.SMEM),
            ],
            out_specs=pl.BlockSpec((1, 1, d), lambda i, perm: (i, 0, 0)),
        ),
        compiler_params=pltpu.CompilerParams(
            dimension_semantics=("parallel",)),
        cost_estimate=pl.CostEstimate(
            flops=num_sel * d,
            transcendentals=0,
            bytes_accessed=2 * num_sel * d * x.dtype.itemsize + 8 * num_sel),
    )(perm, x, sel_score)
    return out.reshape(num_sel, d)


class SAGPoolPallas:
    """Pallas/JAX equivalent of SAGPool(embed_dim, keep_ratio)."""

    def __init__(self, embed_dim, keep_ratio=0.8, key=None):
        key = jax.random.PRNGKey(0) if key is None else key
        k1, k2 = jax.random.split(key)
        # GraphConv(embed_dim, 1): lin_rel (with bias) on aggregated neighbours,
        # lin_root (no bias) on the node itself.  Deterministic synthetic init.
        self.w_rel = jax.random.normal(k1, (embed_dim, 1), jnp.float32) * 0.1
        self.w_root = jax.random.normal(k2, (embed_dim, 1), jnp.float32) * 0.1
        self.b_rel = jnp.array([0.05], jnp.float32)
        # SelectTopK(1, keep_ratio): learnable weight of shape [1].
        self.w_sel = jnp.array([0.7], jnp.float32)
        self.ratio = keep_ratio

    def __call__(self, input_feature, adj, graph_indicator, edge_attr=None,
                 *, nodes_per_graph):
        n, _ = input_feature.shape
        if n % nodes_per_graph != 0:
            raise ValueError("N must be a multiple of nodes_per_graph "
                             "(contiguous equal-size graphs assumed).")
        g = n // nodes_per_graph

        # Fold sign(w_sel) into the projections (zero-guarded) and reassociate
        # (adj @ x) @ w_rel == adj @ (x @ w_rel).  The (N, D) @ (D, 2)
        # projection is O(N*D) plumbing and stays in XLA; note adj could also
        # be cast to bf16 here to halve HBM traffic of the Pallas mat-vec.
        sign = self.w_sel / jnp.maximum(jnp.abs(self.w_sel), 1e-12)     # (1,)
        w = jnp.concatenate([self.w_rel, self.w_root], axis=1) * sign   # (D, 2)
        u = input_feature @ w                                           # (N, 2)
        v_t = u[:, 0][None, :]                                          # (1, N)
        r_t = (u[:, 1] + self.b_rel[0] * sign[0])[None, :]              # (1, N)

        # --- Pallas kernel 1: lane-dense scores ---
        score = compute_scores(adj, v_t, r_t)[0]                        # (N,)

        # --- per-graph top-k node selection (plain JAX index plumbing) ---
        k = math.ceil(self.ratio * nodes_per_graph)                     # PyG ceil
        per_graph = score.reshape(g, nodes_per_graph)
        top_vals, local_idx = lax.top_k(per_graph, k)                   # (g, k)
        offsets = (jnp.arange(g, dtype=jnp.int32) * nodes_per_graph)[:, None]
        perm = (local_idx.astype(jnp.int32) + offsets).reshape(-1)      # (g*k,)
        sel_score = top_vals.reshape(-1)                                # (g*k,) f32

        # --- Pallas kernel 2: gather selected rows and scale by score ---
        new_input_feature = gather_and_scale(input_feature, sel_score, perm)

        # --- FilterEdges equivalent for dense adjacency (plain JAX glue) ---
        new_adj = adj[perm][:, perm]
        new_batch = graph_indicator[perm]
        # TODO(synk): edge_attr filtering only applies to an edge-list graph
        # representation; with a dense adjacency it is passed through unchanged.
        return new_input_feature, new_adj, new_batch, edge_attr


if __name__ == "__main__":
    key = jax.random.PRNGKey(0)
    kx, ka = jax.random.split(key)
    G, nodes_per_graph, D = 2, 8, 128          # 2 graphs of 8 nodes, embed 128
    N = G * nodes_per_graph
    x = jax.random.normal(kx, (N, D), jnp.float32)
    # Random dense 0/1 adjacency restricted to within-graph edges.
    adj = (jax.random.uniform(ka, (N, N)) < 0.3).astype(jnp.float32)
    block_mask = jnp.kron(jnp.eye(G, dtype=jnp.float32),
                          jnp.ones((nodes_per_graph, nodes_per_graph),
                                   jnp.float32))
    adj = adj * block_mask
    graph_indicator = jnp.repeat(jnp.arange(G, dtype=jnp.int32),
                                 nodes_per_graph)

    model = SAGPoolPallas(embed_dim=D, keep_ratio=0.8)
    new_x, new_adj, new_batch, new_edge_attr = model(
        x, adj, graph_indicator, nodes_per_graph=nodes_per_graph)
    jax.block_until_ready((new_x, new_adj, new_batch))

    k = math.ceil(0.8 * nodes_per_graph)
    assert new_x.shape == (G * k, D)
    assert new_adj.shape == (G * k, G * k)
    assert new_batch.shape == (G * k,)
    print("KERNEL_OK")
</pallas_src>

<mosaic_0001>
module attributes {stable_mosaic.version = 11 : i64} {
  func.func @_score_kernel(%arg0: i32, %arg1: memref<1x16xf32, #tpu.memory_space<vmem>>, %arg2: memref<16x16xf32, #tpu.memory_space<vmem>>, %arg3: memref<1x16xf32, #tpu.memory_space<vmem>>, %arg4: memref<1x16xf32, #tpu.memory_space<vmem>>) attributes {dimension_semantics = [#tpu.dimension_semantics<parallel>], iteration_bounds = array<i64: 1>, scalar_prefetch = 0 : i64, scratch_operands = 0 : i64, tpu.core_type = #tpu.core_type<tc>, window_params = [{pipeline_mode = #tpu.pipeline_mode<synchronous>, transform_indices = @transform_0, window_bounds = array<i64: 1, 16>}, {transform_indices = @transform_1, window_bounds = array<i64: 16, 16>}, {transform_indices = @transform_2, window_bounds = array<i64: 1, 16>}, {transform_indices = @transform_3, window_bounds = array<i64: 1, 16>}]} {
    %c0 = arith.constant 0 : index
    %c0_0 = arith.constant 0 : index
    %0 = vector.load %arg1[%c0, %c0_0] : memref<1x16xf32, #tpu.memory_space<vmem>>, vector<1x16xf32>
    %c0_1 = arith.constant 0 : index
    %c0_2 = arith.constant 0 : index
    %1 = vector.load %arg2[%c0_1, %c0_2] : memref<16x16xf32, #tpu.memory_space<vmem>>, vector<16x16xf32>
    %cst = arith.constant dense<0.000000e+00> : vector<1x16xf32>
    %2 = tpu.matmul %0, %1, %cst {dimension_numbers = #tpu.dot_dimension_numbers<[1], [1], [0], [0], [0, 0, 1, 0], [], []>} : vector<1x16xf32>, vector<16x16xf32>, vector<1x16xf32> -> vector<1x16xf32>
    %c0_3 = arith.constant 0 : index
    %c0_4 = arith.constant 0 : index
    %3 = vector.load %arg3[%c0_3, %c0_4] : memref<1x16xf32, #tpu.memory_space<vmem>>, vector<1x16xf32>
    %4 = arith.addf %2, %3 : vector<1x16xf32>
    %5 = math.tanh %4 : vector<1x16xf32>
    %c0_5 = arith.constant 0 : index
    %c0_6 = arith.constant 0 : index
    %6 = vector.load %arg4[%c0_5, %c0_6] : memref<1x16xf32, #tpu.memory_space<vmem>>, vector<1x16xf32>
    tpu.vector_store %arg4[%c0_5, %c0_6], %5 {strides = array<i32>} : memref<1x16xf32, #tpu.memory_space<vmem>>, vector<1x16xf32>,
    return
  }
  func.func @transform_0(%arg0: i32) -> (i32, i32) {
    %c0_i32 = arith.constant 0 : i32
    %c0_i32_0 = arith.constant 0 : i32
    %c0_i32_1 = arith.constant 0 : i32
    return %c0_i32, %c0_i32_0 : i32, i32
  }
  func.func @transform_1(%arg0: i32) -> (i32, i32) {
    %c0_i32 = arith.constant 0 : i32
    %c0_i32_0 = arith.constant 0 : i32
    return %arg0, %c0_i32 : i32, i32
  }
  func.func @transform_2(%arg0: i32) -> (i32, i32) {
    %c0_i32 = arith.constant 0 : i32
    %c0_i32_0 = arith.constant 0 : i32
    return %c0_i32, %arg0 : i32, i32
  }
  func.func @transform_3(%arg0: i32) -> (i32, i32) {
    %c0_i32 = arith.constant 0 : i32
    %c0_i32_0 = arith.constant 0 : i32
    return %c0_i32, %arg0 : i32, i32
  }
}

</mosaic_0001>

<llo_original>
// kernel: tpu_custom_call.1
$region0: #{tpu_custom_call.1}
  #allocation0 [shape = 'u32[]', space=smem, size = 0x4, offset = 0x4, fixed_abs, tag = 'smem constant byte address 0x4 - core index']
  #allocation1 [shape = 'u32[144,128]{1,0:T(1,128)}', space=vmem, size = 0x12000, scoped, tag = 'internal scratch']
  %s0 = inlined_call_operand.hbm [shape: f32[1,16], index: 0, kind: input, shape index: {}]
  %s1 = inlined_call_operand.hbm [shape: f32[16,16], index: 1, kind: input, shape index: {}]
  %s2 = inlined_call_operand.vmem [shape: f32[1,16], index: 2, kind: input, shape index: {}]
  %s3 = inlined_call_operand.hbm [shape: f32[1,16], index: 3, kind: output, shape index: {}]
  %s4 = sld [smem:[#allocation0]]
  $region30: #{tpu_custom_call.1} parent=0
    _
  %s6 = ssub.s32 1, %s4
  %s7 = scalar_select 0, %s6, %s4
  $region1: #{tpu_custom_call.1} parent=0
    #allocation2 [shape = 'u8[512]{0}', space=vmem, size = 0x400, scoped, tag = 'input window, operand 0, single buffered']
    #allocation3 [shape = 's32[1]{0}', space=sflag, size = 0x4, scoped, tag = 'scoped memory for tpu_custom_call.1']
    #allocation4 [shape = 's32[1]{0}', space=sflag, size = 0x4, scoped, tag = 'scoped memory for tpu_custom_call.1']
    #allocation5 [shape = 'u8[8192]{0}', space=vmem, size = 0x2000, scoped, tag = 'input window, operand 1, single buffered']
    #allocation6 [shape = 's32[1]{0}', space=sflag, size = 0x4, scoped, tag = 'scoped memory for tpu_custom_call.1']
    #allocation7 [shape = 'u8[512]{0}', space=vmem, size = 0x400, scoped, tag = 'output window, operand 0, single buffered']
    %8 = vsyncpa [#allocation3], 0
    %9 = vsyncpa [#allocation6], 0
    %10 = vsyncpa [#allocation4], 0
    // Predicated region
    $region2: #{tpu_custom_call.1} parent=1 // pred_check
      _
    $region3: #{tpu_custom_call.1} parent=1 // pred_check_branch
      %12 = sbr.rel (0) target = $region5
    $region4: #{tpu_custom_call.1} parent=1 // pred_region
      %s14 = ssub.s32 16, 16
      %15 = vsyncadd [#allocation3], %s14
      %s17 = sshll.u32 [#allocation2], 4
      %s18 = int_to_ptr.vmem [resolvable:$true] %s17
      %20 = dma.hbm_to_vmem [thread:$0]  %s0, 16, %s18, [#allocation3]
    $region5: #{tpu_custom_call.1} parent=1 // pred_fallthru
      _
    // Predicated region
    $region6: #{tpu_custom_call.1} parent=1 // pred_check
      _
    $region7: #{tpu_custom_call.1} parent=1 // pred_check_branch
      %22 = sbr.rel (0) target = $region9
    $region8: #{tpu_custom_call.1} parent=1 // pred_region
      %s24 = ssub.s32 256, 256
      %25 = vsyncadd [#allocation6], %s24
      %s26 = sshll.u32 [#allocation5], 4
      %s27 = int_to_ptr.vmem [resolvable:$true] %s26
      %32 = dma.hbm_to_vmem [thread:$0]  %s1, 256, %s27, [#allocation6], 128, 128, 8
    $region9: #{tpu_custom_call.1} parent=1 // pred_fallthru
      _
    // Predicated region
    $region10: #{tpu_custom_call.1} parent=1 // pred_check
      _
    $region11: #{tpu_custom_call.1} parent=1 // pred_check_branch
      %34 = sbr.rel (0) target = $region13
    $region12: #{tpu_custom_call.1} parent=1 // pred_region
      _
    $region13: #{tpu_custom_call.1} parent=1 // pred_fallthru
      _
    // Predicated region
    $region14: #{tpu_custom_call.1} parent=1 // pred_check
      _
    $region15: #{tpu_custom_call.1} parent=1 // pred_check_branch
      %36 = sbr.rel (0) target = $region17
    $region16: #{tpu_custom_call.1} parent=1 // pred_region
      %37 = dma.done [#allocation3], 16
    $region17: #{tpu_custom_call.1} parent=1 // pred_fallthru
      _
    // Predicated region
    $region18: #{tpu_custom_call.1} parent=1 // pred_check
      _
    $region19: #{tpu_custom_call.1} parent=1 // pred_check_branch
      %39 = sbr.rel (0) target = $region21
    $region20: #{tpu_custom_call.1} parent=1 // pred_region
      %40 = dma.done [#allocation6], 256
    $region21: #{tpu_custom_call.1} parent=1 // pred_fallthru
      _
    %v41 = vld [vmem:[#allocation2] sm:$0x1]
    %v42 = vld [vmem:[#allocation5] sm:$0xff]
    %v43 = vld [vmem:[#allocation5 + $0x8] sm:$0xff]
    %v44 = vld [vmem:[%s2] sm:$0x1]
    %vm45 = vcmask 130048
    %v47 = vsel %vm45, %v41, 0
    %v50 = vsel %vm45, %v42, 0
    %v53 = vsel %vm45, %v43, 0
    %55 = vmatprep.subr.mxu0 0.0
    %56 = vmatpush1.xpose.msra.mxu0 0.0
    %57 = vmatprep.subr.mxu0 0.0
    %58 = vmatpush1.xpose.msra.mxu0 0.0
    %59 = vmatprep.subr.mxu0 0.0
    %60 = vmatpush1.xpose.msra.mxu0 0.0
    %61 = vmatprep.subr.mxu0 0.0
    %62 = vmatpush1.xpose.msra.mxu0 0.0
    %63 = vmatprep.subr.mxu0 0.0
    %64 = vmatpush1.xpose.msra.mxu0 0.0
    %65 = vmatprep.subr.mxu0 0.0
    %66 = vmatpush1.xpose.msra.mxu0 0.0
    %67 = vmatprep.subr.mxu0 0.0
    %68 = vmatpush1.xpose.msra.mxu0 0.0
    %69 = vmatprep.subr.mxu0 0.0
    %70 = vmatpush1.xpose.msra.mxu0 0.0
    %71 = vmatprep.subr.mxu0 0.0
    %72 = vmatpush1.xpose.msra.mxu0 0.0
    %73 = vmatprep.subr.mxu0 0.0
    %74 = vmatpush1.xpose.msra.mxu0 0.0
    %75 = vmatprep.subr.mxu0 0.0
    %76 = vmatpush1.xpose.msra.mxu0 0.0
    %77 = vmatprep.subr.mxu0 0.0
    %78 = vmatpush1.xpose.msra.mxu0 0.0
    %79 = vmatprep.subr.mxu0 0.0
    %80 = vmatpush1.xpose.msra.mxu0 0.0
    %81 = vmatprep.subr.mxu0 0.0
    %82 = vmatpush1.xpose.msra.mxu0 0.0
    %83 = vmatprep.subr.mxu0 0.0
    %84 = vmatpush1.xpose.msra.mxu0 %v53
    %85 = vmatprep.subr.mxu0 0.0
    %86 = vmatpush1.xpose.msra.mxu0 %v50
    %87 = vmatprep.subr.mxu0 0.0
    %88 = vmatpush2.xpose.msra.mxu0 0.0
    %89 = vmatprep.subr.mxu0 0.0
    %90 = vmatpush2.xpose.msra.mxu0 0.0
    %91 = vmatprep.subr.mxu0 0.0
    %92 = vmatpush2.xpose.msra.mxu0 0.0
    %93 = vmatprep.subr.mxu0 0.0
    %94 = vmatpush2.xpose.msra.mxu0 0.0
    %95 = vmatprep.subr.mxu0 0.0
    %96 = vmatpush2.xpose.msra.mxu0 0.0
    %97 = vmatprep.subr.mxu0 0.0
    %98 = vmatpush2.xpose.msra.mxu0 0.0
    %99 = vmatprep.subr.mxu0 0.0
    %100 = vmatpush2.xpose.msra.mxu0 0.0
    %101 = vmatprep.subr.mxu0 0.0
    %102 = vmatpush2.xpose.msra.mxu0 0.0
    %103 = vmatprep.subr.mxu0 0.0
    %104 = vmatpush2.xpose.msra.mxu0 0.0
    %105 = vmatprep.subr.mxu0 0.0
    %106 = vmatpush2.xpose.msra.mxu0 0.0
    %107 = vmatprep.subr.mxu0 0.0
    %108 = vmatpush2.xpose.msra.mxu0 0.0
    %109 = vmatprep.subr.mxu0 0.0
    %110 = vmatpush2.xpose.msra.mxu0 0.0
    %111 = vmatprep.subr.mxu0 0.0
    %112 = vmatpush2.xpose.msra.mxu0 0.0
    %113 = vmatprep.subr.mxu0 0.0
    %114 = vmatpush2.xpose.msra.mxu0 0.0
    %115 = vmatprep.subr.mxu0 0.0
    %116 = vmatpush2.xpose.msra.mxu0 0.0
    %117 = vmatprep.subr.mxu0 0.0
    %118 = vmatpush2.xpose.msra.mxu0 0.0
    %119 = vmatprep.mubr.f32.mxu0 0.0
    %120 = vmatmul.mubr.f32.gmra.mxu0 %v47
    %v121 = vpop.f32.mrf.mxu0
    %v122 = vadd.f32 %v44, %v121
    %v123 = vpop.f32.mrf.mxu0
    %124 = vdwg.mxu0
    %v125 = vtanh.pop %v122
    %vm126 = vcmask 122880
    %127 = vst.msk [vmem:[#allocation7] sm:$0x1] %vm126, %v125
    // Predicated region
    $region22: #{tpu_custom_call.1} parent=1 // pred_check
      _
    $region23: #{tpu_custom_call.1} parent=1 // pred_check_branch
      %129 = sbr.rel (0) target = $region25
    $region24: #{tpu_custom_call.1} parent=1 // pred_region
      %s131 = ssub.s32 16, 16
      %132 = vsyncadd [#allocation4], %s131
      %s134 = sshll.u32 [#allocation7], 4
      %s135 = int_to_ptr.vmem [resolvable:$true] %s134
      %137 = dma.vmem_to_hbm [thread:$0]  %s135, 16, %s3, [#allocation4]
    $region25: #{tpu_custom_call.1} parent=1 // pred_fallthru
      _
    // Predicated region
    $region26: #{tpu_custom_call.1} parent=1 // pred_check
      _
    $region27: #{tpu_custom_call.1} parent=1 // pred_check_branch
      %139 = sbr.rel (0) target = $region29
    $region28: #{tpu_custom_call.1} parent=1 // pred_region
      %140 = dma.done [#allocation4], 16
    $region29: #{tpu_custom_call.1} parent=1 // pred_fallthru
      _
    %141 = vsyncpa [#allocation3], 1
    %142 = vsyncpa [#allocation6], 1
    %143 = vsyncpa [#allocation4], 1

</llo_original>
